<compile_context>
chip_gen: v6e
topology: v6e:2x2x1
jax: 0.10.0
libtpu: 0.0.40
codegen_flags: <defaults>
</compile_context>

<pallas_src>
import functools

import jax
import jax.numpy as jnp
from jax.experimental import pallas as pl
from jax.experimental.pallas import tpu as pltpu


def _fused_convT_kernel(x_ref, w_ref, b_ref, o_ref, *, taps, cin2p, m, tb):
    """One batch-tile per grid step, copy-free per-tap accumulation.

    x_ref : (TB, Cin2p, Lp)  flattened, zero-dilated, padded input (channel-major)
    w_ref : (Cout2, K)       fused / spatially flipped weights, K = n_taps*Cin2p
    b_ref : (Cout2, 1)       fused bias (f32)
    o_ref : (TB, Cout2, M)   M = H_out*Wp  (long, lane-dense spatial axis)
    """
    w = w_ref[...]
    bias = b_ref[...]
    for b in range(tb):                       # TB <= 8, small static unroll
        xb = x_ref[b]                         # (Cin2p, Lp)
        acc = None
        for t, off in enumerate(taps):
            # TODO(synk): `off` is not lane-aligned; if vrot/select traffic
            # ever dominates the bundle dump, build the kw shifts with
            # pltpu.roll (XLU slot is idle in this kernel).
            part = jnp.dot(w[:, t * cin2p:(t + 1) * cin2p],
                           xb[:, off:off + m],
                           preferred_element_type=jnp.float32)
            acc = part if acc is None else acc + part
        o_ref[b] = (acc + bias).astype(o_ref.dtype)


def _vmem_budget_and_limit():
    """Per-generation VMEM budget (for tiling) and compiler limit."""
    try:
        cap = int(getattr(pltpu.get_tpu_info(), "vmem_capacity_bytes", 0) or 0)
    except Exception:
        cap = 0
    if cap <= 0:
        cap = 64 * 1024 * 1024          # conservative: v7x per-core VMEM
    # Blocks sized against ~50% of physical VMEM; compiler allowed ~75%
    # (headroom for double buffering + internal scratch).
    return cap // 2, (cap * 3) // 4


def complex_conv2d_decoder(x, Wr, Wi, br, bi, *,
                           stride=(1, 1), padding=(0, 0),
                           output_padding=(0, 0), dilation=(1, 1),
                           compute_dtype=jnp.bfloat16):
    """Pallas implementation of ComplexConv2d_Decoder.forward.

    x : (B, C_in, H, W, 2) float32 — PyTorch NCHW + complex last dim.
    Wr, Wi : (C_in, C_out, kH, kW) — ConvTranspose2d weights (groups=1).
    br, bi : (C_out,)              — ConvTranspose2d biases.
    compute_dtype : bf16 (default, fast on v5e/v6e/v7x; f32 accumulation) or
                    float32 for bit-accuracy against the PyTorch module.
    returns (B, C_out, H_out, min(W, W_out), 2) float32.
    Note: padding > dilation*(kernel_size-1) (negative equivalent padding) is
    not supported.
    """
    B, Cin, H, W, _ = x.shape
    Cout, kH, kW = Wr.shape[1], Wr.shape[2], Wr.shape[3]
    sh, sw = stride
    ph, pw = padding
    oph, opw = output_padding
    dh, dw = dilation
    Cin2, Cout2 = 2 * Cin, 2 * Cout

    elt = jnp.dtype(compute_dtype).itemsize
    chan_align = {4: 8, 2: 16, 1: 32}.get(elt, 8)   # sublane packing per dtype
    Cin2p = ((Cin2 + chan_align - 1) // chan_align) * chan_align
    K = kH * kW * Cin2p

    # ---- fuse the two complex ConvTranspose2d into one conv (tiny, XLA) ----
    # input channels [real(Cin), imag(Cin)], output channels [real(Cout), imag(Cout)]
    top = jnp.concatenate([Wr, Wi], axis=1)               # real-input contribution
    bot = jnp.concatenate([-Wi, Wr], axis=1)              # imag-input contribution
    W_big = jnp.concatenate([top, bot], axis=0)           # (Cin2, Cout2, kH, kW)
    W_big = jnp.pad(W_big, ((0, Cin2p - Cin2), (0, 0), (0, 0), (0, 0)))
    b_big = jnp.concatenate([br - bi, br + bi])           # (Cout2,)

    # transposed conv == stride-1 correlation over dilated/padded input with
    # spatially flipped weights.
    W_flip = W_big[:, :, ::-1, ::-1]
    W_mat = jnp.transpose(W_flip, (2, 3, 0, 1)).reshape(K, Cout2).T   # (Cout2, K)

    # ---- input prep: cast early so every pad moves compute_dtype bytes ----
    xr, xi = x[..., 0], x[..., 1]
    xc = jnp.concatenate([xr, xi], axis=1).astype(compute_dtype)      # (B, Cin2, H, W)
    if Cin2p > Cin2:
        xc = jnp.concatenate(
            [xc, jnp.zeros((B, Cin2p - Cin2, H, W), compute_dtype)], axis=1)

    # zero-insertion for stride, built with pad+reshape (no scatter).
    # TODO(synk): polyphase decomposition would skip the inserted zero
    # rows/cols entirely (~sh*sw less DMA / load / MAC) at the cost of a
    # strided output interleave; deferred.
    Hd = (H - 1) * sh + 1
    Wd = (W - 1) * sw + 1
    if sh > 1 or sw > 1:
        xz = xc.reshape(B, Cin2p, H, 1, W, 1)
        xz = jnp.pad(xz, ((0, 0), (0, 0), (0, 0), (0, sh - 1), (0, 0), (0, sw - 1)))
        xd = xz.reshape(B, Cin2p, H * sh, W * sw)[:, :, :Hd, :Wd]
    else:
        xd = xc

    pad_t = dh * (kH - 1) - ph
    pad_l = dw * (kW - 1) - pw
    if pad_t < 0 or pad_l < 0:
        raise ValueError(
            "padding > dilation*(kernel_size-1) (negative equivalent padding) "
            "is not supported by this kernel")
    pad_b = pad_t + oph
    pad_r = pad_l + opw
    Hp, Wp = Hd + pad_t + pad_b, Wd + pad_l + pad_r
    H_out = Hp - dh * (kH - 1)
    W_out = Wp - dw * (kW - 1)
    W_crop = min(W, W_out)                 # the module crops width to input width

    # The last output row's taps read up to dw*(kW-1) elements past Hp*Wp on
    # the flattened axis; cover that with extra bottom rows folded into the
    # same spatial pad (no separate flat tail pad / extra materialisation).
    tail = dw * (kW - 1)
    extra_rows = -(-tail // Wp) if tail > 0 else 0
    x_pad = jnp.pad(xd, ((0, 0), (0, 0), (pad_t, pad_b + extra_rows), (pad_l, pad_r)))
    Lp = (Hp + extra_rows) * Wp
    M = H_out * Wp                          # long, lane-dense output axis
    x_flat = x_pad.reshape(B, Cin2p, Lp)

    taps = tuple(kh * dh * Wp + kw * dw for kh in range(kH) for kw in range(kW))

    # ---- batch-tile selection against a per-generation VMEM budget ----
    budget, vmem_limit = _vmem_budget_and_limit()
    in_block = elt * Cin2p * Lp             # per image, double-buffered
    out_block = 4 * Cout2 * M               # f32 output block, double-buffered
    acc_live = 4 * Cout2 * M                # in-flight accumulator per image
    fixed = 2 * (elt * Cout2 * K + 4 * Cout2)   # weights + bias (buffered, tiny)
    tb_cap = min(8, B // 2) if B >= 2 else 1    # >=2 grid steps -> both v7x TCs
    TB = 1
    for cand in range(max(tb_cap, 1), 0, -1):
        if B % cand:
            continue
        if 2 * cand * (in_block + out_block) + cand * acc_live + fixed <= budget:
            TB = cand
            break
    # TODO(synk): for frames where even TB=1 overflows the budget, add a grid
    # axis over H_out row-tiles (kH*dh-row halo in the index_map) so v7x's
    # 64 MiB VMEM still fits; also consider pipeline_mode=pl.Buffered(3) on
    # the input spec if profiling shows exposed DMA at step boundaries.

    kernel = functools.partial(_fused_convT_kernel,
                               taps=taps, cin2p=Cin2p, m=M, tb=TB)

    out = pl.pallas_call(
        kernel,
        out_shape=jax.ShapeDtypeStruct((B, Cout2, M), jnp.float32),
        grid=(B // TB,),
        in_specs=[
            pl.BlockSpec((TB, Cin2p, Lp), lambda i: (i, 0, 0)),
            pl.BlockSpec((Cout2, K), lambda i: (0, 0)),
            pl.BlockSpec((Cout2, 1), lambda i: (0, 0)),
        ],
        out_specs=pl.BlockSpec((TB, Cout2, M), lambda i: (i, 0, 0)),
        compiler_params=pltpu.CompilerParams(
            dimension_semantics=("parallel",),
            vmem_limit_bytes=int(vmem_limit)),
    )(x_flat, W_mat.astype(compute_dtype),
      b_big.reshape(Cout2, 1).astype(jnp.float32))

    # Output is already (B, channels, H, W)-ordered: crop width, split complex.
    out = out.reshape(B, Cout2, H_out, Wp)[:, :, :, :W_crop]
    return jnp.stack([out[:, :Cout], out[:, Cout:]], axis=-1)


def _reference(x, Wr, Wi, br, bi, *, stride, padding, output_padding, dilation):
    """Pure-JAX reference mirroring the PyTorch module structure (XLA conv)."""
    sh, sw = stride
    ph, pw = padding
    oph, opw = output_padding
    dh, dw = dilation
    kH, kW = Wr.shape[2], Wr.shape[3]

    def convT(z, Wt, b):
        rhs = jnp.transpose(Wt[:, :, ::-1, ::-1], (1, 0, 2, 3))   # (Cout, Cin, kH, kW)
        y = jax.lax.conv_general_dilated(
            z, rhs, window_strides=(1, 1),
            padding=[(dh * (kH - 1) - ph, dh * (kH - 1) - ph + oph),
                     (dw * (kW - 1) - pw, dw * (kW - 1) - pw + opw)],
            lhs_dilation=(sh, sw), rhs_dilation=(dh, dw),
            dimension_numbers=('NCHW', 'OIHW', 'NCHW'))
        return y + b[None, :, None, None]

    xr, xi = x[..., 0], x[..., 1]
    out_r = convT(xr, Wr, br) - convT(xi, Wi, bi)
    out_i = convT(xi, Wr, br) + convT(xr, Wi, bi)
    out_r = out_r[..., :xr.shape[-1]]
    out_i = out_i[..., :xi.shape[-1]]
    return jnp.stack([out_r, out_i], axis=-1)


def _run_case(key, *, B, H, W, Cin, Cout, kernel_size, stride, padding,
              output_padding, dilation, compute_dtype, atol, rtol):
    k1, k2, k3, k4, kx = jax.random.split(key, 5)
    Wr = 0.1 * jax.random.normal(k1, (Cin, Cout, *kernel_size), jnp.float32)
    Wi = 0.1 * jax.random.normal(k2, (Cin, Cout, *kernel_size), jnp.float32)
    br = 0.1 * jax.random.normal(k3, (Cout,), jnp.float32)
    bi = 0.1 * jax.random.normal(k4, (Cout,), jnp.float32)
    x = jax.random.normal(kx, (B, Cin, H, W, 2), jnp.float32)

    out = complex_conv2d_decoder(
        x, Wr, Wi, br, bi, stride=stride, padding=padding,
        output_padding=output_padding, dilation=dilation,
        compute_dtype=compute_dtype)
    out = jax.block_until_ready(out)

    ref = _reference(
        x, Wr, Wi, br, bi, stride=stride, padding=padding,
        output_padding=output_padding, dilation=dilation)
    ref = jax.block_until_ready(ref)

    assert out.shape == ref.shape, (out.shape, ref.shape)
    err = float(jnp.max(jnp.abs(out - ref)))
    assert jnp.allclose(out, ref, atol=atol, rtol=rtol), err


if __name__ == "__main__":
    key = jax.random.PRNGKey(0)
    k1, k2, k3 = jax.random.split(key, 3)
    # f32 compute path (bit-accuracy): typical decoder config with stride,
    # padding, output_padding and the module's width crop.
    _run_case(k1, B=2, H=8, W=16, Cin=4, Cout=6, kernel_size=(3, 2),
              stride=(2, 1), padding=(1, 0), output_padding=(1, 0),
              dilation=(1, 1), compute_dtype=jnp.float32, atol=2e-4, rtol=2e-4)
    # f32 compute, stride-1 config with odd channel counts (channel padding).
    _run_case(k2, B=2, H=6, W=12, Cin=3, Cout=5, kernel_size=(2, 3),
              stride=(1, 1), padding=(0, 1), output_padding=(0, 0),
              dilation=(1, 1), compute_dtype=jnp.float32, atol=2e-4, rtol=2e-4)
    # bf16 compute (the fast default): exercises the 16-sublane channel
    # alignment; accumulation stays f32, tolerance relaxed accordingly.
    _run_case(k3, B=2, H=8, W=16, Cin=4, Cout=6, kernel_size=(3, 2),
              stride=(2, 1), padding=(1, 0), output_padding=(1, 0),
              dilation=(1, 1), compute_dtype=jnp.bfloat16, atol=5e-2, rtol=5e-2)
    print("KERNEL_OK")
</pallas_src>

<mosaic_0001>
module attributes {stable_mosaic.version = 11 : i64} {
  func.func @_fused_convT_kernel(%arg0: i32, %arg1: memref<1x8x342xf32, #tpu.memory_space<vmem>>, %arg2: memref<12x48xf32, #tpu.memory_space<vmem>>, %arg3: memref<12x1xf32, #tpu.memory_space<vmem>>, %arg4: memref<1x12x288xf32, #tpu.memory_space<vmem>>) attributes {dimension_semantics = [#tpu.dimension_semantics<parallel>], iteration_bounds = array<i64: 2>, scalar_prefetch = 0 : i64, scratch_operands = 0 : i64, tpu.core_type = #tpu.core_type<tc>, window_params = [{transform_indices = @transform_0, window_bounds = array<i64: 1, 8, 342>}, {pipeline_mode = #tpu.pipeline_mode<synchronous>, transform_indices = @transform_1, window_bounds = array<i64: 12, 48>}, {pipeline_mode = #tpu.pipeline_mode<synchronous>, transform_indices = @transform_2, window_bounds = array<i64: 12, 1>}, {transform_indices = @transform_3, window_bounds = array<i64: 1, 12, 288>}]} {
    %c0 = arith.constant 0 : index
    %c0_0 = arith.constant 0 : index
    %0 = vector.load %arg2[%c0, %c0_0] : memref<12x48xf32, #tpu.memory_space<vmem>>, vector<12x48xf32>
    %c0_1 = arith.constant 0 : index
    %c0_2 = arith.constant 0 : index
    %1 = vector.load %arg3[%c0_1, %c0_2] : memref<12x1xf32, #tpu.memory_space<vmem>>, vector<12x1xf32>
    %c0_3 = arith.constant 0 : index
    %c0_4 = arith.constant 0 : index
    %c0_5 = arith.constant 0 : index
    %2 = vector.load %arg1[%c0_3, %c0_4, %c0_5] : memref<1x8x342xf32, #tpu.memory_space<vmem>>, vector<1x8x342xf32>
    %3 = vector.shape_cast %2 : vector<1x8x342xf32> to vector<8x342xf32>
    %4 = vector.extract_strided_slice %0 {offsets = [0, 0], sizes = [12, 8], strides = [1, 1]} : vector<12x48xf32> to vector<12x8xf32>
    %5 = vector.extract_strided_slice %3 {offsets = [0, 0], sizes = [8, 288], strides = [1, 1]} : vector<8x342xf32> to vector<8x288xf32>
    %cst = arith.constant dense<0.000000e+00> : vector<12x288xf32>
    %6 = tpu.matmul %4, %5, %cst {dimension_numbers = #tpu.dot_dimension_numbers<[1], [0], [0], [1], [0, 0, 1, 1], [], []>} : vector<12x8xf32>, vector<8x288xf32>, vector<12x288xf32> -> vector<12x288xf32>
    %7 = vector.extract_strided_slice %0 {offsets = [0, 8], sizes = [12, 8], strides = [1, 1]} : vector<12x48xf32> to vector<12x8xf32>
    %8 = vector.extract_strided_slice %3 {offsets = [0, 1], sizes = [8, 288], strides = [1, 1]} : vector<8x342xf32> to vector<8x288xf32>
    %cst_6 = arith.constant dense<0.000000e+00> : vector<12x288xf32>
    %9 = tpu.matmul %7, %8, %cst_6 {dimension_numbers = #tpu.dot_dimension_numbers<[1], [0], [0], [1], [0, 0, 1, 1], [], []>} : vector<12x8xf32>, vector<8x288xf32>, vector<12x288xf32> -> vector<12x288xf32>
    %10 = arith.addf %6, %9 : vector<12x288xf32>
    %11 = vector.extract_strided_slice %0 {offsets = [0, 16], sizes = [12, 8], strides = [1, 1]} : vector<12x48xf32> to vector<12x8xf32>
    %12 = vector.extract_strided_slice %3 {offsets = [0, 18], sizes = [8, 288], strides = [1, 1]} : vector<8x342xf32> to vector<8x288xf32>
    %cst_7 = arith.constant dense<0.000000e+00> : vector<12x288xf32>
    %13 = tpu.matmul %11, %12, %cst_7 {dimension_numbers = #tpu.dot_dimension_numbers<[1], [0], [0], [1], [0, 0, 1, 1], [], []>} : vector<12x8xf32>, vector<8x288xf32>, vector<12x288xf32> -> vector<12x288xf32>
    %14 = arith.addf %10, %13 : vector<12x288xf32>
    %15 = vector.extract_strided_slice %0 {offsets = [0, 24], sizes = [12, 8], strides = [1, 1]} : vector<12x48xf32> to vector<12x8xf32>
    %16 = vector.extract_strided_slice %3 {offsets = [0, 19], sizes = [8, 288], strides = [1, 1]} : vector<8x342xf32> to vector<8x288xf32>
    %cst_8 = arith.constant dense<0.000000e+00> : vector<12x288xf32>
    %17 = tpu.matmul %15, %16, %cst_8 {dimension_numbers = #tpu.dot_dimension_numbers<[1], [0], [0], [1], [0, 0, 1, 1], [], []>} : vector<12x8xf32>, vector<8x288xf32>, vector<12x288xf32> -> vector<12x288xf32>
    %18 = arith.addf %14, %17 : vector<12x288xf32>
    %19 = vector.extract_strided_slice %0 {offsets = [0, 32], sizes = [12, 8], strides = [1, 1]} : vector<12x48xf32> to vector<12x8xf32>
    %20 = vector.extract_strided_slice %3 {offsets = [0, 36], sizes = [8, 288], strides = [1, 1]} : vector<8x342xf32> to vector<8x288xf32>
    %cst_9 = arith.constant dense<0.000000e+00> : vector<12x288xf32>
    %21 = tpu.matmul %19, %20, %cst_9 {dimension_numbers = #tpu.dot_dimension_numbers<[1], [0], [0], [1], [0, 0, 1, 1], [], []>} : vector<12x8xf32>, vector<8x288xf32>, vector<12x288xf32> -> vector<12x288xf32>
    %22 = arith.addf %18, %21 : vector<12x288xf32>
    %23 = vector.extract_strided_slice %0 {offsets = [0, 40], sizes = [12, 8], strides = [1, 1]} : vector<12x48xf32> to vector<12x8xf32>
    %24 = vector.extract_strided_slice %3 {offsets = [0, 37], sizes = [8, 288], strides = [1, 1]} : vector<8x342xf32> to vector<8x288xf32>
    %cst_10 = arith.constant dense<0.000000e+00> : vector<12x288xf32>
    %25 = tpu.matmul %23, %24, %cst_10 {dimension_numbers = #tpu.dot_dimension_numbers<[1], [0], [0], [1], [0, 0, 1, 1], [], []>} : vector<12x8xf32>, vector<8x288xf32>, vector<12x288xf32> -> vector<12x288xf32>
    %26 = arith.addf %22, %25 : vector<12x288xf32>
    %27 = vector.broadcast %1 : vector<12x1xf32> to vector<12x288xf32>
    %28 = arith.addf %26, %27 : vector<12x288xf32>
    %c0_11 = arith.constant 0 : index
    %c0_12 = arith.constant 0 : index
    %c0_13 = arith.constant 0 : index
    %29 = vector.load %arg4[%c0_11, %c0_12, %c0_13] : memref<1x12x288xf32, #tpu.memory_space<vmem>>, vector<1x12x288xf32>
    %30 = vector.shape_cast %29 : vector<1x12x288xf32> to vector<12x288xf32>
    %31 = vector.shape_cast %28 : vector<12x288xf32> to vector<1x12x288xf32>
    tpu.vector_store %arg4[%c0_11, %c0_12, %c0_13], %31 {strides = array<i32>} : memref<1x12x288xf32, #tpu.memory_space<vmem>>, vector<1x12x288xf32>,
    return
  }
  func.func @transform_0(%arg0: i32) -> (i32, i32, i32) {
    %c0_i32 = arith.constant 0 : i32
    %c0_i32_0 = arith.constant 0 : i32
    %c0_i32_1 = arith.constant 0 : i32
    return %arg0, %c0_i32, %c0_i32_0 : i32, i32, i32
  }
  func.func @transform_1(%arg0: i32) -> (i32, i32) {
    %c0_i32 = arith.constant 0 : i32
    %c0_i32_0 = arith.constant 0 : i32
    %c0_i32_1 = arith.constant 0 : i32
    return %c0_i32, %c0_i32_0 : i32, i32
  }
  func.func @transform_2(%arg0: i32) -> (i32, i32) {
    %c0_i32 = arith.constant 0 : i32
    %c0_i32_0 = arith.constant 0 : i32
    %c0_i32_1 = arith.constant 0 : i32
    return %c0_i32, %c0_i32_0 : i32, i32
  }
  func.func @transform_3(%arg0: i32) -> (i32, i32, i32) {
    %c0_i32 = arith.constant 0 : i32
    %c0_i32_0 = arith.constant 0 : i32
    %c0_i32_1 = arith.constant 0 : i32
    return %arg0, %c0_i32, %c0_i32_0 : i32, i32, i32
  }
}

</mosaic_0001>

<llo_original>
// kernel: tpu_custom_call.1
$region0: #{tpu_custom_call.1}
  #allocation0 [shape = 'u32[]', space=smem, size = 0x4, offset = 0x4, fixed_abs, tag = 'smem constant byte address 0x4 - core index']
  #allocation1 [shape = 'u32[144,128]{1,0:T(1,128)}', space=vmem, size = 0x12000, scoped, tag = 'internal scratch']
  %s0 = inlined_call_operand.hbm [shape: f32[2,8,342], index: 0, kind: input, shape index: {}]
  %s1 = inlined_call_operand.vmem [shape: f32[12,48], index: 1, kind: input, shape index: {}]
  %s2 = inlined_call_operand.vmem [shape: f32[12,1], index: 2, kind: input, shape index: {}]
  %s3 = inlined_call_operand.vmem [shape: f32[2,12,288], index: 3, kind: output, shape index: {}]
  %s4 = sld [smem:[#allocation0]]
  $region49: #{tpu_custom_call.1} parent=0
    _
  %s6 = ssub.s32 1, %s4
  %s7 = scalar_select 0, %s6, %s4
  $region1: #{tpu_custom_call.1} parent=0
    #allocation2 [shape = 'u8[24576]{0}', space=vmem, size = 0x6000, scoped, tag = 'input window, operand 0']
    #allocation3 [shape = 's32[2]{0}', space=sflag, size = 0x8, scoped, tag = 'scoped memory for tpu_custom_call.1']
    %8 = vsyncpa [#allocation3], 0
    %s9 = scalar_lea.sflag [#allocation3], 1
    %10 = vsyncpa %s9, 0
    loop: start=0, step=1, limit=4
    $region2: #{tpu_custom_call.1} parent=1 // loop_pre_header
      _
    $region3: #{tpu_custom_call.1} parent=1 // loop_header
      %s12 = sphi 0, %s16
      %p13 = scmp.ge.s32.totalorder %s12, 4
      %s22 = sphi 0, %s24
      %s25 = sphi 0, %s22
      %s26 = sphi 0, %s25
      %s42 = sphi 0, %s26
      %s46 = sphi 0, %s46
      %s48 = sphi 0, %s46
      %s49 = sphi 0, %s48
      %s63 = sphi 0, %s49
      %s67 = sphi 0, %s67
      %s69 = sphi 0, %s67
      %s70 = sphi 0, %s69
      %s84 = sphi 0, %s70
      %s90 = sphi 0, %s92
      %s93 = sphi 0, %s90
      %s94 = sphi 0, %s93
      %s110 = sphi 0, %s94
    $region4: #{tpu_custom_call.1} parent=1 // loop_header_branch
      %15 = sbr.rel (%p13) target = $region8
    $region5: #{tpu_custom_call.1} parent=1 // loop_body
      %s17 = ssub.s32 %s12, 1
      %s18 = ssub.s32 %s12, 2
      %s19 = sadd.s32 %s12, 1
      %s20 = ssub.s32 %s12, %s19
      %p21 = scmp.eq.s32.totalorder %s20, 0
      %s23 = sadd.s32 %s22, 1
      %s24 = scalar_select %p21, %s22, %s23
      %p27 = pneg %p21
      %p28 = scmp.eq.s32.totalorder %s12, 1
      %p29 = por %p27, %p28
      %p30 = scmp.ne.s32.totalorder %s22, %s25
      %p31 = scmp.eq.s32.totalorder %s12, 0
      %p32 = por %p30, %p31
      %p33 = scmp.ne.s32.totalorder %s22, %s25
      %p34 = scmp.eq.s32.totalorder %s17, 1
      %p35 = por %p33, %p34
      %p36 = scmp.ne.s32.totalorder %s25, %s26
      %p37 = scmp.eq.s32.totalorder %s17, 0
      %p38 = por %p36, %p37
      %p39 = scmp.ne.s32.totalorder %s25, %s26
      %p40 = scmp.eq.s32.totalorder %s18, 1
      %p41 = por %p39, %p40
      %p43 = scmp.ne.s32.totalorder %s26, %s42
      %p44 = scmp.eq.s32.totalorder %s18, 0
      %p45 = por %p43, %p44
      %s47 = sadd.s32 %s46, 1
      %p50 = scmp.eq.s32.totalorder %s12, 1
      %p51 = scmp.ne.s32.totalorder %s46, %s48
      %p52 = scmp.eq.s32.totalorder %s12, 0
      %p53 = por %p51, %p52
      %p54 = scmp.ne.s32.totalorder %s46, %s48
      %p55 = scmp.eq.s32.totalorder %s17, 1
      %p56 = por %p54, %p55
      %p57 = scmp.ne.s32.totalorder %s48, %s49
      %p58 = scmp.eq.s32.totalorder %s17, 0
      %p59 = por %p57, %p58
      %p60 = scmp.ne.s32.totalorder %s48, %s49
      %p61 = scmp.eq.s32.totalorder %s18, 1
      %p62 = por %p60, %p61
      %p64 = scmp.ne.s32.totalorder %s49, %s63
      %p65 = scmp.eq.s32.totalorder %s18, 0
      %p66 = por %p64, %p65
      %s68 = sadd.s32 %s67, 1
      %p71 = scmp.eq.s32.totalorder %s12, 1
      %p72 = scmp.ne.s32.totalorder %s67, %s69
      %p73 = scmp.eq.s32.totalorder %s12, 0
      %p74 = por %p72, %p73
      %p75 = scmp.ne.s32.totalorder %s67, %s69
      %p76 = scmp.eq.s32.totalorder %s17, 1
      %p77 = por %p75, %p76
      %p78 = scmp.ne.s32.totalorder %s69, %s70
      %p79 = scmp.eq.s32.totalorder %s17, 0
      %p80 = por %p78, %p79
      %p81 = scmp.ne.s32.totalorder %s69, %s70
      %p82 = scmp.eq.s32.totalorder %s18, 1
      %p83 = por %p81, %p82
      %p85 = scmp.ne.s32.totalorder %s70, %s84
      %p86 = scmp.eq.s32.totalorder %s18, 0
      %p87 = por %p85, %p86
      %s88 = ssub.s32 %s12, %s19
      %p89 = scmp.eq.s32.totalorder %s88, 0
      %s91 = sadd.s32 %s90, 1
      %s92 = scalar_select %p89, %s90, %s91
      %p95 = pneg %p89
      %p96 = scmp.eq.s32.totalorder %s12, 1
      %p97 = por %p95, %p96
      %p98 = scmp.ne.s32.totalorder %s90, %s93
      %p99 = scmp.eq.s32.totalorder %s12, 0
      %p100 = por %p98, %p99
      %p101 = scmp.ne.s32.totalorder %s90, %s93
      %p102 = scmp.eq.s32.totalorder %s17, 1
      %p103 = por %p101, %p102
      %p104 = scmp.ne.s32.totalorder %s93, %s94
      %p105 = scmp.eq.s32.totalorder %s17, 0
      %p106 = por %p104, %p105
      %p107 = scmp.ne.s32.totalorder %s93, %s94
      %p108 = scmp.eq.s32.totalorder %s18, 1
      %p109 = por %p107, %p108
      %p111 = scmp.ne.s32.totalorder %s94, %s110
      %p112 = scmp.eq.s32.totalorder %s18, 0
      %p113 = por %p111, %p112
      %p114 = scmp.le.s32.totalorder 1, %s12
      %p115 = scmp.lt.s32.totalorder %s12, 3
      %p116 = pnand %p114, %p115
      %p117 = pneg %p116
      // Predicated region
      $region9: #{tpu_custom_call.1} parent=5 // pred_check
        _
      $region10: #{tpu_custom_call.1} parent=5 // pred_check_branch
        %119 = sbr.rel (%p116) target = $region12
      $region11: #{tpu_custom_call.1} parent=5 // pred_region
        %s120 = ssub.s32 %s12, 1
        // Predicated region
        $region13: #{tpu_custom_call.1} parent=11 // pred_check
          %p121 = pneg %p59
        $region14: #{tpu_custom_call.1} parent=11 // pred_check_branch
          %123 = sbr.rel (%p121) target = $region16
        $region15: #{tpu_custom_call.1} parent=11 // pred_region
          _
        $region16: #{tpu_custom_call.1} parent=11 // pred_fallthru
          _
        // Predicated region
        $region17: #{tpu_custom_call.1} parent=11 // pred_check
          %p124 = pneg %p80
        $region18: #{tpu_custom_call.1} parent=11 // pred_check_branch
          %126 = sbr.rel (%p124) target = $region20
        $region19: #{tpu_custom_call.1} parent=11 // pred_region
          _
        $region20: #{tpu_custom_call.1} parent=11 // pred_fallthru
          _
      $region12: #{tpu_custom_call.1} parent=5 // pred_fallthru
        _
      %p127 = scmp.lt.s32.totalorder %s12, 2
      // Predicated region
      $region21: #{tpu_custom_call.1} parent=5 // pred_check
        %p128 = pneg %p127
      $region22: #{tpu_custom_call.1} parent=5 // pred_check_branch
        %130 = sbr.rel (%p128) target = $region24
      $region23: #{tpu_custom_call.1} parent=5 // pred_region
        // Predicated region
        $region25: #{tpu_custom_call.1} parent=23 // pred_check
          %p131 = pneg %p32
        $region26: #{tpu_custom_call.1} parent=23 // pred_check_branch
          %133 = sbr.rel (%p131) target = $region28
        $region27: #{tpu_custom_call.1} parent=23 // pred_region
          %s134 = sand.u32 %s22, 1
          %s135 = scalar_lea.sflag [#allocation3], %s134
          %s136 = sand.u32 %s22, 1
          %s137 = smul.addr %s136, 24
          %s138 = scalar_lea.vmem [#allocation2], %s137
          %s140 = ssub.s32 384, 384
          %141 = vsyncadd %s135, %s140
          %s142 = smul.addr %s12, 3
          %s143 = smul.addr %s142, 128
          %s144 = scalar_lea.hbm %s0, %s143
          %s146 = sshll.u32 %s138, 4
          %s147 = int_to_ptr.vmem [resolvable:$true] %s146
          %149 = dma.hbm_to_vmem [thread:$0]  %s144, 384, %s147, %s135
        $region28: #{tpu_custom_call.1} parent=23 // pred_fallthru
          _
      $region24: #{tpu_custom_call.1} parent=5 // pred_fallthru
        _
      %p150 = scmp.le.s32.totalorder 1, %s12
      %p151 = scmp.lt.s32.totalorder %s12, 3
      %p152 = pnand %p150, %p151
      %p153 = pneg %p152
      // Predicated region
      $region29: #{tpu_custom_call.1} parent=5 // pred_check
        _
      $region30: #{tpu_custom_call.1} parent=5 // pred_check_branch
        %155 = sbr.rel (%p152) target = $region32
      $region31: #{tpu_custom_call.1} parent=5 // pred_region
        %s156 = ssub.s32 %s12, 1
        %s157 = sand.u32 %s25, 1
        %s158 = scalar_lea.sflag [#allocation3], %s157
        %s159 = sand.u32 %s25, 1
        %s160 = smul.addr %s159, 24
        %s161 = scalar_lea.vmem [#allocation2], %s160
        // Predicated region
        $region33: #{tpu_custom_call.1} parent=31 // pred_check
          %p162 = pneg %p38
        $region34: #{tpu_custom_call.1} parent=31 // pred_check_branch
          %164 = sbr.rel (%p162) target = $region36
        $region35: #{tpu_custom_call.1} parent=31 // pred_region
          %165 = dma.done %s158, 384
        $region36: #{tpu_custom_call.1} parent=31 // pred_fallthru
          _
        %s166 = sand.u32 %s25, 1
        %s167 = scalar_lea.sflag [#allocation3], %s166
        %s168 = sand.u32 %s25, 1
        %s169 = smul.addr %s168, 24
        %s170 = scalar_lea.vmem [#allocation2], %s169
        %p171 = pneg %p38
        %p172 = pneg %p35
        %p173 = pneg %p59
        %p174 = pneg %p56
        %p175 = pneg %p80
        %p176 = pneg %p77
        %p177 = pneg %p106
        %p178 = pneg %p103
        %p179 = scmp.lt.s32.totalorder %s17, 1
        %s180 = scalar_select %p179, %s17, 1
        %s181 = smul.addr %s180, 6
        %s182 = smul.addr %s181, 8
        %s183 = scalar_lea.vmem %s3, %s182
        %p184 = scmp.lt.s32.totalorder %s17, 1
        %s185 = scalar_select %p184, %s17, 1
        %s186 = smul.addr %s185, 6
        %s187 = smul.addr %s186, 8
        %s188 = scalar_lea.vmem %s3, %s187
        %v189 = vld [vmem:[%s1] sm:$0xff]
        %v190 = vld [vmem:[%s1 + $0x8] sm:$0xf]
        %v191 = vld [vmem:[%s2] sm:$0xff]
        %v192 = vld [vmem:[%s2 + $0x8] sm:$0xf]
        %v193 = vld [vmem:[%s161] sm:$0xff]
        %v194 = vld [vmem:[%s161 + $0x8] sm:$0xff]
        %v195 = vld [vmem:[%s161 + $0x10] sm:$0xff]
        %198 = vrot.lane.b32.xlu0 %v189, 120
        %v199 = vpop.permute.xlu0 %198
        %200 = vrot.lane.b32.xlu0 %v190, 120
        %v201 = vpop.permute.xlu0 %200
        %205 = vrot.lane.b32.xlu0 %v193, 127
        %v206 = vpop.permute.xlu0 %205
        %207 = vrot.lane.b32.xlu0 %v194, 127
        %v208 = vpop.permute.xlu0 %207
        %209 = vrot.lane.b32.xlu0 %v195, 127
        %v210 = vpop.permute.xlu0 %209
        %vm211 = vcmask 1039360
        %v212 = vsel %vm211, %v206, %v208
        %v213 = vsel %vm211, %v208, %v210
        %vm217 = vcmask 64512
        %v218 = vsel %vm217, %v199, 0
        %v220 = vsel %vm217, %v201, 0
        %222 = vmatprep.subr.mxu0 0.0
        %223 = vmatpush1.msra.mxu0 0.0
        %224 = vmatprep.subr.mxu0 0.0
        %225 = vmatpush1.msra.mxu0 0.0
        %226 = vmatprep.subr.mxu0 0.0
        %227 = vmatpush1.msra.mxu0 0.0
        %228 = vmatprep.subr.mxu0 0.0
        %229 = vmatpush1.msra.mxu0 0.0
        %230 = vmatprep.subr.mxu0 0.0
        %231 = vmatpush1.msra.mxu0 0.0
        %232 = vmatprep.subr.mxu0 0.0
        %233 = vmatpush1.msra.mxu0 0.0
        %234 = vmatprep.subr.mxu0 0.0
        %235 = vmatpush1.msra.mxu0 0.0
        %236 = vmatprep.subr.mxu0 0.0
        %237 = vmatpush1.msra.mxu0 0.0
        %238 = vmatprep.subr.mxu0 0.0
        %239 = vmatpush1.msra.mxu0 0.0
        %240 = vmatprep.subr.mxu0 0.0
        %241 = vmatpush1.msra.mxu0 0.0
        %242 = vmatprep.subr.mxu0 0.0
        %243 = vmatpush1.msra.mxu0 0.0
        %244 = vmatprep.subr.mxu0 0.0
        %245 = vmatpush1.msra.mxu0 0.0
        %246 = vmatprep.subr.mxu0 0.0
        %247 = vmatpush1.msra.mxu0 0.0
        %248 = vmatprep.subr.mxu0 0.0
        %249 = vmatpush1.msra.mxu0 0.0
        %250 = vmatprep.subr.mxu0 0.0
        %251 = vmatpush1.msra.mxu0 0.0
        %252 = vmatprep.subr.mxu0 %v213
        %253 = vmatpush1.msra.mxu0 %v212
        %254 = vmatprep.subr.mxu0 0.0
        %255 = vmatpush2.msra.mxu0 0.0
        %256 = vmatprep.subr.mxu0 0.0
        %257 = vmatpush2.msra.mxu0 0.0
        %258 = vmatprep.subr.mxu0 0.0
        %259 = vmatpush2.msra.mxu0 0.0
        %260 = vmatprep.subr.mxu0 0.0
        %261 = vmatpush2.msra.mxu0 0.0
        %262 = vmatprep.subr.mxu0 0.0
        %263 = vmatpush2.msra.mxu0 0.0
        %264 = vmatprep.subr.mxu0 0.0
        %265 = vmatpush2.msra.mxu0 0.0
        %266 = vmatprep.subr.mxu0 0.0
        %267 = vmatpush2.msra.mxu0 0.0
        %268 = vmatprep.subr.mxu0 0.0
        %269 = vmatpush2.msra.mxu0 0.0
        %270 = vmatprep.subr.mxu0 0.0
        %271 = vmatpush2.msra.mxu0 0.0
        %272 = vmatprep.subr.mxu0 0.0
        %273 = vmatpush2.msra.mxu0 0.0
        %274 = vmatprep.subr.mxu0 0.0
        %275 = vmatpush2.msra.mxu0 0.0
        %276 = vmatprep.subr.mxu0 0.0
        %277 = vmatpush2.msra.mxu0 0.0
        %278 = vmatprep.subr.mxu0 0.0
        %279 = vmatpush2.msra.mxu0 0.0
        %280 = vmatprep.subr.mxu0 0.0
        %281 = vmatpush2.msra.mxu0 0.0
        %282 = vmatprep.subr.mxu0 0.0
        %283 = vmatpush2.msra.mxu0 0.0
        %284 = vmatprep.subr.mxu0 0.0
        %285 = vmatpush2.msra.mxu0 0.0
        %286 = vmatprep.mubr.f32.mxu0 0.0
        %287 = vmatmul.mubr.f32.gmra.mxu0 %v218
        %v288 = vpop.f32.mrf.mxu0
        %v289 = vadd.f32 0.0, %v288
        %v290 = vpop.f32.mrf.mxu0
        %v291 = vadd.f32 0.0, %v290
        %292 = vmatprep.mubr.f32.mxu0 0.0
        %293 = vmatmul.mubr.f32.gmra.mxu0 %v220
        %v294 = vpop.f32.mrf.mxu0
        %v295 = vadd.f32 0.0, %v294
        %v296 = vpop.f32.mrf.mxu0
        %v297 = vadd.f32 0.0, %v296
        %298 = vdwg.mxu0
        %299 = vmatprep.subr.mxu0 0.0
        %300 = vmatpush1.msra.mxu0 0.0
        %301 = vmatprep.subr.mxu0 0.0
        %302 = vmatpush1.msra.mxu0 0.0
        %303 = vmatprep.subr.mxu0 0.0
        %304 = vmatpush1.msra.mxu0 0.0
        %305 = vmatprep.subr.mxu0 0.0
        %306 = vmatpush1.msra.mxu0 0.0
        %307 = vmatprep.subr.mxu0 0.0
        %308 = vmatpush1.msra.mxu0 0.0
        %309 = vmatprep.subr.mxu0 0.0
        %310 = vmatpush1.msra.mxu0 0.0
        %311 = vmatprep.subr.mxu0 0.0
        %312 = vmatpush1.msra.mxu0 0.0
        %313 = vmatprep.subr.mxu0 0.0
        %314 = vmatpush1.msra.mxu0 0.0
        %315 = vmatprep.subr.mxu0 0.0
        %316 = vmatpush1.msra.mxu0 0.0
        %317 = vmatprep.subr.mxu0 0.0
        %318 = vmatpush1.msra.mxu0 0.0
        %319 = vmatprep.subr.mxu0 0.0
        %320 = vmatpush1.msra.mxu0 0.0
        %321 = vmatprep.subr.mxu0 0.0
        %322 = vmatpush1.msra.mxu0 0.0
        %323 = vmatprep.subr.mxu0 0.0
        %324 = vmatpush1.msra.mxu0 0.0
        %325 = vmatprep.subr.mxu0 0.0
        %326 = vmatpush1.msra.mxu0 0.0
        %327 = vmatprep.subr.mxu0 0.0
        %328 = vmatpush1.msra.mxu0 0.0
        %329 = vmatprep.subr.mxu0 0.0
        %330 = vmatpush1.msra.mxu0 %v210
        %331 = vmatprep.subr.mxu0 0.0
        %332 = vmatpush2.msra.mxu0 0.0
        %333 = vmatprep.subr.mxu0 0.0
        %334 = vmatpush2.msra.mxu0 0.0
        %335 = vmatprep.subr.mxu0 0.0
        %336 = vmatpush2.msra.mxu0 0.0
        %337 = vmatprep.subr.mxu0 0.0
        %338 = vmatpush2.msra.mxu0 0.0
        %339 = vmatprep.subr.mxu0 0.0
        %340 = vmatpush2.msra.mxu0 0.0
        %341 = vmatprep.subr.mxu0 0.0
        %342 = vmatpush2.msra.mxu0 0.0
        %343 = vmatprep.subr.mxu0 0.0
        %344 = vmatpush2.msra.mxu0 0.0
        %345 = vmatprep.subr.mxu0 0.0
        %346 = vmatpush2.msra.mxu0 0.0
        %347 = vmatprep.subr.mxu0 0.0
        %348 = vmatpush2.msra.mxu0 0.0
        %349 = vmatprep.subr.mxu0 0.0
        %350 = vmatpush2.msra.mxu0 0.0
        %351 = vmatprep.subr.mxu0 0.0
        %352 = vmatpush2.msra.mxu0 0.0
        %353 = vmatprep.subr.mxu0 0.0
        %354 = vmatpush2.msra.mxu0 0.0
        %355 = vmatprep.subr.mxu0 0.0
        %356 = vmatpush2.msra.mxu0 0.0
        %357 = vmatprep.subr.mxu0 0.0
        %358 = vmatpush2.msra.mxu0 0.0
        %359 = vmatprep.subr.mxu0 0.0
        %360 = vmatpush2.msra.mxu0 0.0
        %361 = vmatprep.subr.mxu0 0.0
        %362 = vmatpush2.msra.mxu0 0.0
        %363 = vmatprep.mubr.f32.mxu0 0.0
        %364 = vmatmul.mubr.f32.gmra.mxu0 %v218
        %v365 = vpop.f32.mrf.mxu0
        %v366 = vadd.f32 0.0, %v365
        %v367 = vpop.f32.mrf.mxu0
        %368 = vmatprep.mubr.f32.mxu0 0.0
        %369 = vmatmul.mubr.f32.gmra.mxu0 %v220
        %v370 = vpop.f32.mrf.mxu0
        %v371 = vadd.f32 0.0, %v370
        %v372 = vpop.f32.mrf.mxu0
        %373 = vdwg.mxu0
        %v374 = vsel %vm217, %v189, 0
        %v376 = vsel %vm217, %v190, 0
        %378 = vmatprep.subr.mxu0 0.0
        %379 = vmatpush1.msra.mxu0 0.0
        %380 = vmatprep.subr.mxu0 0.0
        %381 = vmatpush1.msra.mxu0 0.0
        %382 = vmatprep.subr.mxu0 0.0
        %383 = vmatpush1.msra.mxu0 0.0
        %384 = vmatprep.subr.mxu0 0.0
        %385 = vmatpush1.msra.mxu0 0.0
        %386 = vmatprep.subr.mxu0 0.0
        %387 = vmatpush1.msra.mxu0 0.0
        %388 = vmatprep.subr.mxu0 0.0
        %389 = vmatpush1.msra.mxu0 0.0
        %390 = vmatprep.subr.mxu0 0.0
        %391 = vmatpush1.msra.mxu0 0.0
        %392 = vmatprep.subr.mxu0 0.0
        %393 = vmatpush1.msra.mxu0 0.0
        %394 = vmatprep.subr.mxu0 0.0
        %395 = vmatpush1.msra.mxu0 0.0
        %396 = vmatprep.subr.mxu0 0.0
        %397 = vmatpush1.msra.mxu0 0.0
        %398 = vmatprep.subr.mxu0 0.0
        %399 = vmatpush1.msra.mxu0 0.0
        %400 = vmatprep.subr.mxu0 0.0
        %401 = vmatpush1.msra.mxu0 0.0
        %402 = vmatprep.subr.mxu0 0.0
        %403 = vmatpush1.msra.mxu0 0.0
        %404 = vmatprep.subr.mxu0 0.0
        %405 = vmatpush1.msra.mxu0 0.0
        %406 = vmatprep.subr.mxu0 0.0
        %407 = vmatpush1.msra.mxu0 0.0
        %408 = vmatprep.subr.mxu0 %v194
        %409 = vmatpush1.msra.mxu0 %v193
        %410 = vmatprep.subr.mxu0 0.0
        %411 = vmatpush2.msra.mxu0 0.0
        %412 = vmatprep.subr.mxu0 0.0
        %413 = vmatpush2.msra.mxu0 0.0
        %414 = vmatprep.subr.mxu0 0.0
        %415 = vmatpush2.msra.mxu0 0.0
        %416 = vmatprep.subr.mxu0 0.0
        %417 = vmatpush2.msra.mxu0 0.0
        %418 = vmatprep.subr.mxu0 0.0
        %419 = vmatpush2.msra.mxu0 0.0
        %420 = vmatprep.subr.mxu0 0.0
        %421 = vmatpush2.msra.mxu0 0.0
        %422 = vmatprep.subr.mxu0 0.0
        %423 = vmatpush2.msra.mxu0 0.0
        %424 = vmatprep.subr.mxu0 0.0
        %425 = vmatpush2.msra.mxu0 0.0
        %426 = vmatprep.subr.mxu0 0.0
        %427 = vmatpush2.msra.mxu0 0.0
        %428 = vmatprep.subr.mxu0 0.0
        %429 = vmatpush2.msra.mxu0 0.0
        %430 = vmatprep.subr.mxu0 0.0
        %431 = vmatpush2.msra.mxu0 0.0
        %432 = vmatprep.subr.mxu0 0.0
        %433 = vmatpush2.msra.mxu0 0.0
        %434 = vmatprep.subr.mxu0 0.0
        %435 = vmatpush2.msra.mxu0 0.0
        %436 = vmatprep.subr.mxu0 0.0
        %437 = vmatpush2.msra.mxu0 0.0
        %438 = vmatprep.subr.mxu0 0.0
        %439 = vmatpush2.msra.mxu0 0.0
        %440 = vmatprep.subr.mxu0 0.0
        %441 = vmatpush2.msra.mxu0 0.0
        %442 = vmatprep.mubr.f32.mxu0 0.0
        %443 = vmatmul.mubr.f32.gmra.mxu0 %v374
        %v444 = vpop.f32.mrf.mxu0
        %v445 = vadd.f32 %v289, %v444
        %v446 = vpop.f32.mrf.mxu0
        %v447 = vadd.f32 %v291, %v446
        %448 = vmatprep.mubr.f32.mxu0 0.0
        %449 = vmatmul.mubr.f32.gmra.mxu0 %v376
        %v450 = vpop.f32.mrf.mxu0
        %v451 = vadd.f32 %v295, %v450
        %v452 = vpop.f32.mrf.mxu0
        %v453 = vadd.f32 %v297, %v452
        %454 = vdwg.mxu0
        %455 = vmatprep.subr.mxu0 0.0
        %456 = vmatpush1.msra.mxu0 0.0
        %457 = vmatprep.subr.mxu0 0.0
        %458 = vmatpush1.msra.mxu0 0.0
        %459 = vmatprep.subr.mxu0 0.0
        %460 = vmatpush1.msra.mxu0 0.0
        %461 = vmatprep.subr.mxu0 0.0
        %462 = vmatpush1.msra.mxu0 0.0
        %463 = vmatprep.subr.mxu0 0.0
        %464 = vmatpush1.msra.mxu0 0.0
        %465 = vmatprep.subr.mxu0 0.0
        %466 = vmatpush1.msra.mxu0 0.0
        %467 = vmatprep.subr.mxu0 0.0
        %468 = vmatpush1.msra.mxu0 0.0
        %469 = vmatprep.subr.mxu0 0.0
        %470 = vmatpush1.msra.mxu0 0.0
        %471 = vmatprep.subr.mxu0 0.0
        %472 = vmatpush1.msra.mxu0 0.0
        %473 = vmatprep.subr.mxu0 0.0
        %474 = vmatpush1.msra.mxu0 0.0
        %475 = vmatprep.subr.mxu0 0.0
        %476 = vmatpush1.msra.mxu0 0.0
        %477 = vmatprep.subr.mxu0 0.0
        %478 = vmatpush1.msra.mxu0 0.0
        %479 = vmatprep.subr.mxu0 0.0
        %480 = vmatpush1.msra.mxu0 0.0
        %481 = vmatprep.subr.mxu0 0.0
        %482 = vmatpush1.msra.mxu0 0.0
        %483 = vmatprep.subr.mxu0 0.0
        %484 = vmatpush1.msra.mxu0 0.0
        %485 = vmatprep.subr.mxu0 0.0
        %486 = vmatpush1.msra.mxu0 %v195
        %487 = vmatprep.subr.mxu0 0.0
        %488 = vmatpush2.msra.mxu0 0.0
        %489 = vmatprep.subr.mxu0 0.0
        %490 = vmatpush2.msra.mxu0 0.0
        %491 = vmatprep.subr.mxu0 0.0
        %492 = vmatpush2.msra.mxu0 0.0
        %493 = vmatprep.subr.mxu0 0.0
        %494 = vmatpush2.msra.mxu0 0.0
        %495 = vmatprep.subr.mxu0 0.0
        %496 = vmatpush2.msra.mxu0 0.0
        %497 = vmatprep.subr.mxu0 0.0
        %498 = vmatpush2.msra.mxu0 0.0
        %499 = vmatprep.subr.mxu0 0.0
        %500 = vmatpush2.msra.mxu0 0.0
        %501 = vmatprep.subr.mxu0 0.0
        %502 = vmatpush2.msra.mxu0 0.0
        %503 = vmatprep.subr.mxu0 0.0
        %504 = vmatpush2.msra.mxu0 0.0
        %505 = vmatprep.subr.mxu0 0.0
        %506 = vmatpush2.msra.mxu0 0.0
        %507 = vmatprep.subr.mxu0 0.0
        %508 = vmatpush2.msra.mxu0 0.0
        %509 = vmatprep.subr.mxu0 0.0
        %510 = vmatpush2.msra.mxu0 0.0
        %511 = vmatprep.subr.mxu0 0.0
        %512 = vmatpush2.msra.mxu0 0.0
        %513 = vmatprep.subr.mxu0 0.0
        %514 = vmatpush2.msra.mxu0 0.0
        %515 = vmatprep.subr.mxu0 0.0
        %516 = vmatpush2.msra.mxu0 0.0
        %517 = vmatprep.subr.mxu0 0.0
        %518 = vmatpush2.msra.mxu0 0.0
        %519 = vmatprep.mubr.f32.mxu0 0.0
        %520 = vmatmul.mubr.f32.gmra.mxu0 %v374
        %v521 = vpop.f32.mrf.mxu0
        %v522 = vadd.f32 %v366, %v521
        %v523 = vpop.f32.mrf.mxu0
        %524 = vmatprep.mubr.f32.mxu0 0.0
        %525 = vmatmul.mubr.f32.gmra.mxu0 %v376
        %v526 = vpop.f32.mrf.mxu0
        %v527 = vadd.f32 %v371, %v526
        %v528 = vpop.f32.mrf.mxu0
        %529 = vdwg.mxu0
        %530 = vrot.lane.b32.xlu0 %v189, 112
        %v531 = vpop.permute.xlu0 %530
        %532 = vrot.lane.b32.xlu0 %v190, 112
        %v533 = vpop.permute.xlu0 %532
        %534 = vrot.lane.b32.xlu0 %v193, 110
        %v535 = vpop.permute.xlu0 %534
        %536 = vrot.lane.b32.xlu0 %v194, 110
        %v537 = vpop.permute.xlu0 %536
        %538 = vrot.lane.b32.xlu0 %v195, 110
        %v539 = vpop.permute.xlu0 %538
        %vm540 = vcmask 900096
        %v541 = vsel %vm540, %v535, %v537
        %v542 = vsel %vm540, %v537, %v539
        %v546 = vsel %vm217, %v531, 0
        %v548 = vsel %vm217, %v533, 0
        %550 = vmatprep.subr.mxu0 0.0
        %551 = vmatpush1.msra.mxu0 0.0
        %552 = vmatprep.subr.mxu0 0.0
        %553 = vmatpush1.msra.mxu0 0.0
        %554 = vmatprep.subr.mxu0 0.0
        %555 = vmatpush1.msra.mxu0 0.0
        %556 = vmatprep.subr.mxu0 0.0
        %557 = vmatpush1.msra.mxu0 0.0
        %558 = vmatprep.subr.mxu0 0.0
        %559 = vmatpush1.msra.mxu0 0.0
        %560 = vmatprep.subr.mxu0 0.0
        %561 = vmatpush1.msra.mxu0 0.0
        %562 = vmatprep.subr.mxu0 0.0
        %563 = vmatpush1.msra.mxu0 0.0
        %564 = vmatprep.subr.mxu0 0.0
        %565 = vmatpush1.msra.mxu0 0.0
        %566 = vmatprep.subr.mxu0 0.0
        %567 = vmatpush1.msra.mxu0 0.0
        %568 = vmatprep.subr.mxu0 0.0
        %569 = vmatpush1.msra.mxu0 0.0
        %570 = vmatprep.subr.mxu0 0.0
        %571 = vmatpush1.msra.mxu0 0.0
        %572 = vmatprep.subr.mxu0 0.0
        %573 = vmatpush1.msra.mxu0 0.0
        %574 = vmatprep.subr.mxu0 0.0
        %575 = vmatpush1.msra.mxu0 0.0
        %576 = vmatprep.subr.mxu0 0.0
        %577 = vmatpush1.msra.mxu0 0.0
        %578 = vmatprep.subr.mxu0 0.0
        %579 = vmatpush1.msra.mxu0 0.0
        %580 = vmatprep.subr.mxu0 %v542
        %581 = vmatpush1.msra.mxu0 %v541
        %582 = vmatprep.subr.mxu0 0.0
        %583 = vmatpush2.msra.mxu0 0.0
        %584 = vmatprep.subr.mxu0 0.0
        %585 = vmatpush2.msra.mxu0 0.0
        %586 = vmatprep.subr.mxu0 0.0
        %587 = vmatpush2.msra.mxu0 0.0
        %588 = vmatprep.subr.mxu0 0.0
        %589 = vmatpush2.msra.mxu0 0.0
        %590 = vmatprep.subr.mxu0 0.0
        %591 = vmatpush2.msra.mxu0 0.0
        %592 = vmatprep.subr.mxu0 0.0
        %593 = vmatpush2.msra.mxu0 0.0
        %594 = vmatprep.subr.mxu0 0.0
        %595 = vmatpush2.msra.mxu0 0.0
        %596 = vmatprep.subr.mxu0 0.0
        %597 = vmatpush2.msra.mxu0 0.0
        %598 = vmatprep.subr.mxu0 0.0
        %599 = vmatpush2.msra.mxu0 0.0
        %600 = vmatprep.subr.mxu0 0.0
        %601 = vmatpush2.msra.mxu0 0.0
        %602 = vmatprep.subr.mxu0 0.0
        %603 = vmatpush2.msra.mxu0 0.0
        %604 = vmatprep.subr.mxu0 0.0
        %605 = vmatpush2.msra.mxu0 0.0
        %606 = vmatprep.subr.mxu0 0.0
        %607 = vmatpush2.msra.mxu0 0.0
        %608 = vmatprep.subr.mxu0 0.0
        %609 = vmatpush2.msra.mxu0 0.0
        %610 = vmatprep.subr.mxu0 0.0
        %611 = vmatpush2.msra.mxu0 0.0
        %612 = vmatprep.subr.mxu0 0.0
        %613 = vmatpush2.msra.mxu0 0.0
        %614 = vmatprep.mubr.f32.mxu0 0.0
        %615 = vmatmul.mubr.f32.gmra.mxu0 %v546
        %v616 = vpop.f32.mrf.mxu0
        %v617 = vadd.f32 0.0, %v616
        %v618 = vpop.f32.mrf.mxu0
        %v619 = vadd.f32 0.0, %v618
        %620 = vmatprep.mubr.f32.mxu0 0.0
        %621 = vmatmul.mubr.f32.gmra.mxu0 %v548
        %v622 = vpop.f32.mrf.mxu0
        %v623 = vadd.f32 0.0, %v622
        %v624 = vpop.f32.mrf.mxu0
        %v625 = vadd.f32 0.0, %v624
        %626 = vdwg.mxu0
        %627 = vmatprep.subr.mxu0 0.0
        %628 = vmatpush1.msra.mxu0 0.0
        %629 = vmatprep.subr.mxu0 0.0
        %630 = vmatpush1.msra.mxu0 0.0
        %631 = vmatprep.subr.mxu0 0.0
        %632 = vmatpush1.msra.mxu0 0.0
        %633 = vmatprep.subr.mxu0 0.0
        %634 = vmatpush1.msra.mxu0 0.0
        %635 = vmatprep.subr.mxu0 0.0
        %636 = vmatpush1.msra.mxu0 0.0
        %637 = vmatprep.subr.mxu0 0.0
        %638 = vmatpush1.msra.mxu0 0.0
        %639 = vmatprep.subr.mxu0 0.0
        %640 = vmatpush1.msra.mxu0 0.0
        %641 = vmatprep.subr.mxu0 0.0
        %642 = vmatpush1.msra.mxu0 0.0
        %643 = vmatprep.subr.mxu0 0.0
        %644 = vmatpush1.msra.mxu0 0.0
        %645 = vmatprep.subr.mxu0 0.0
        %646 = vmatpush1.msra.mxu0 0.0
        %647 = vmatprep.subr.mxu0 0.0
        %648 = vmatpush1.msra.mxu0 0.0
        %649 = vmatprep.subr.mxu0 0.0
        %650 = vmatpush1.msra.mxu0 0.0
        %651 = vmatprep.subr.mxu0 0.0
        %652 = vmatpush1.msra.mxu0 0.0
        %653 = vmatprep.subr.mxu0 0.0
        %654 = vmatpush1.msra.mxu0 0.0
        %655 = vmatprep.subr.mxu0 0.0
        %656 = vmatpush1.msra.mxu0 0.0
        %657 = vmatprep.subr.mxu0 0.0
        %658 = vmatpush1.msra.mxu0 %v539
        %659 = vmatprep.subr.mxu0 0.0
        %660 = vmatpush2.msra.mxu0 0.0
        %661 = vmatprep.subr.mxu0 0.0
        %662 = vmatpush2.msra.mxu0 0.0
        %663 = vmatprep.subr.mxu0 0.0
        %664 = vmatpush2.msra.mxu0 0.0
        %665 = vmatprep.subr.mxu0 0.0
        %666 = vmatpush2.msra.mxu0 0.0
        %667 = vmatprep.subr.mxu0 0.0
        %668 = vmatpush2.msra.mxu0 0.0
        %669 = vmatprep.subr.mxu0 0.0
        %670 = vmatpush2.msra.mxu0 0.0
        %671 = vmatprep.subr.mxu0 0.0
        %672 = vmatpush2.msra.mxu0 0.0
        %673 = vmatprep.subr.mxu0 0.0
        %674 = vmatpush2.msra.mxu0 0.0
        %675 = vmatprep.subr.mxu0 0.0
        %676 = vmatpush2.msra.mxu0 0.0
        %677 = vmatprep.subr.mxu0 0.0
        %678 = vmatpush2.msra.mxu0 0.0
        %679 = vmatprep.subr.mxu0 0.0
        %680 = vmatpush2.msra.mxu0 0.0
        %681 = vmatprep.subr.mxu0 0.0
        %682 = vmatpush2.msra.mxu0 0.0
        %683 = vmatprep.subr.mxu0 0.0
        %684 = vmatpush2.msra.mxu0 0.0
        %685 = vmatprep.subr.mxu0 0.0
        %686 = vmatpush2.msra.mxu0 0.0
        %687 = vmatprep.subr.mxu0 0.0
        %688 = vmatpush2.msra.mxu0 0.0
        %689 = vmatprep.subr.mxu0 0.0
        %690 = vmatpush2.msra.mxu0 0.0
        %691 = vmatprep.mubr.f32.mxu0 0.0
        %692 = vmatmul.mubr.f32.gmra.mxu0 %v546
        %v693 = vpop.f32.mrf.mxu0
        %v694 = vadd.f32 0.0, %v693
        %v695 = vpop.f32.mrf.mxu0
        %696 = vmatprep.mubr.f32.mxu0 0.0
        %697 = vmatmul.mubr.f32.gmra.mxu0 %v548
        %v698 = vpop.f32.mrf.mxu0
        %v699 = vadd.f32 0.0, %v698
        %v700 = vpop.f32.mrf.mxu0
        %701 = vdwg.mxu0
        %v702 = vadd.f32 %v445, %v617
        %v703 = vadd.f32 %v447, %v619
        %v704 = vadd.f32 %v522, %v694
        %v705 = vadd.f32 %v451, %v623
        %v706 = vadd.f32 %v453, %v625
        %v707 = vadd.f32 %v527, %v699
        %708 = vrot.lane.b32.xlu0 %v189, 104
        %v709 = vpop.permute.xlu0 %708
        %710 = vrot.lane.b32.xlu0 %v190, 104
        %v711 = vpop.permute.xlu0 %710
        %712 = vrot.lane.b32.xlu0 %v193, 109
        %v713 = vpop.permute.xlu0 %712
        %714 = vrot.lane.b32.xlu0 %v194, 109
        %v715 = vpop.permute.xlu0 %714
        %716 = vrot.lane.b32.xlu0 %v195, 109
        %v717 = vpop.permute.xlu0 %716
        %vm718 = vcmask 891904
        %v719 = vsel %vm718, %v713, %v715
        %v720 = vsel %vm718, %v715, %v717
        %v724 = vsel %vm217, %v709, 0
        %v726 = vsel %vm217, %v711, 0
        %728 = vmatprep.subr.mxu0 0.0
        %729 = vmatpush1.msra.mxu0 0.0
        %730 = vmatprep.subr.mxu0 0.0
        %731 = vmatpush1.msra.mxu0 0.0
        %732 = vmatprep.subr.mxu0 0.0
        %733 = vmatpush1.msra.mxu0 0.0
        %734 = vmatprep.subr.mxu0 0.0
        %735 = vmatpush1.msra.mxu0 0.0
        %736 = vmatprep.subr.mxu0 0.0
        %737 = vmatpush1.msra.mxu0 0.0
        %738 = vmatprep.subr.mxu0 0.0
        %739 = vmatpush1.msra.mxu0 0.0
        %740 = vmatprep.subr.mxu0 0.0
        %741 = vmatpush1.msra.mxu0 0.0
        %742 = vmatprep.subr.mxu0 0.0
        %743 = vmatpush1.msra.mxu0 0.0
        %744 = vmatprep.subr.mxu0 0.0
        %745 = vmatpush1.msra.mxu0 0.0
        %746 = vmatprep.subr.mxu0 0.0
        %747 = vmatpush1.msra.mxu0 0.0
        %748 = vmatprep.subr.mxu0 0.0
        %749 = vmatpush1.msra.mxu0 0.0
        %750 = vmatprep.subr.mxu0 0.0
        %751 = vmatpush1.msra.mxu0 0.0
        %752 = vmatprep.subr.mxu0 0.0
        %753 = vmatpush1.msra.mxu0 0.0
        %754 = vmatprep.subr.mxu0 0.0
        %755 = vmatpush1.msra.mxu0 0.0
        %756 = vmatprep.subr.mxu0 0.0
        %757 = vmatpush1.msra.mxu0 0.0
        %758 = vmatprep.subr.mxu0 %v720
        %759 = vmatpush1.msra.mxu0 %v719
        %760 = vmatprep.subr.mxu0 0.0
        %761 = vmatpush2.msra.mxu0 0.0
        %762 = vmatprep.subr.mxu0 0.0
        %763 = vmatpush2.msra.mxu0 0.0
        %764 = vmatprep.subr.mxu0 0.0
        %765 = vmatpush2.msra.mxu0 0.0
        %766 = vmatprep.subr.mxu0 0.0
        %767 = vmatpush2.msra.mxu0 0.0
        %768 = vmatprep.subr.mxu0 0.0
        %769 = vmatpush2.msra.mxu0 0.0
        %770 = vmatprep.subr.mxu0 0.0
        %771 = vmatpush2.msra.mxu0 0.0
        %772 = vmatprep.subr.mxu0 0.0
        %773 = vmatpush2.msra.mxu0 0.0
        %774 = vmatprep.subr.mxu0 0.0
        %775 = vmatpush2.msra.mxu0 0.0
        %776 = vmatprep.subr.mxu0 0.0
        %777 = vmatpush2.msra.mxu0 0.0
        %778 = vmatprep.subr.mxu0 0.0
        %779 = vmatpush2.msra.mxu0 0.0
        %780 = vmatprep.subr.mxu0 0.0
        %781 = vmatpush2.msra.mxu0 0.0
        %782 = vmatprep.subr.mxu0 0.0
        %783 = vmatpush2.msra.mxu0 0.0
        %784 = vmatprep.subr.mxu0 0.0
        %785 = vmatpush2.msra.mxu0 0.0
        %786 = vmatprep.subr.mxu0 0.0
        %787 = vmatpush2.msra.mxu0 0.0
        %788 = vmatprep.subr.mxu0 0.0
        %789 = vmatpush2.msra.mxu0 0.0
        %790 = vmatprep.subr.mxu0 0.0
        %791 = vmatpush2.msra.mxu0 0.0
        %792 = vmatprep.mubr.f32.mxu0 0.0
        %793 = vmatmul.mubr.f32.gmra.mxu0 %v724
        %v794 = vpop.f32.mrf.mxu0
        %v795 = vadd.f32 0.0, %v794
        %v796 = vpop.f32.mrf.mxu0
        %v797 = vadd.f32 0.0, %v796
        %798 = vmatprep.mubr.f32.mxu0 0.0
        %799 = vmatmul.mubr.f32.gmra.mxu0 %v726
        %v800 = vpop.f32.mrf.mxu0
        %v801 = vadd.f32 0.0, %v800
        %v802 = vpop.f32.mrf.mxu0
        %v803 = vadd.f32 0.0, %v802
        %804 = vdwg.mxu0
        %805 = vmatprep.subr.mxu0 0.0
        %806 = vmatpush1.msra.mxu0 0.0
        %807 = vmatprep.subr.mxu0 0.0
        %808 = vmatpush1.msra.mxu0 0.0
        %809 = vmatprep.subr.mxu0 0.0
        %810 = vmatpush1.msra.mxu0 0.0
        %811 = vmatprep.subr.mxu0 0.0
        %812 = vmatpush1.msra.mxu0 0.0
        %813 = vmatprep.subr.mxu0 0.0
        %814 = vmatpush1.msra.mxu0 0.0
        %815 = vmatprep.subr.mxu0 0.0
        %816 = vmatpush1.msra.mxu0 0.0
        %817 = vmatprep.subr.mxu0 0.0
        %818 = vmatpush1.msra.mxu0 0.0
        %819 = vmatprep.subr.mxu0 0.0
        %820 = vmatpush1.msra.mxu0 0.0
        %821 = vmatprep.subr.mxu0 0.0
        %822 = vmatpush1.msra.mxu0 0.0
        %823 = vmatprep.subr.mxu0 0.0
        %824 = vmatpush1.msra.mxu0 0.0
        %825 = vmatprep.subr.mxu0 0.0
        %826 = vmatpush1.msra.mxu0 0.0
        %827 = vmatprep.subr.mxu0 0.0
        %828 = vmatpush1.msra.mxu0 0.0
        %829 = vmatprep.subr.mxu0 0.0
        %830 = vmatpush1.msra.mxu0 0.0
        %831 = vmatprep.subr.mxu0 0.0
        %832 = vmatpush1.msra.mxu0 0.0
        %833 = vmatprep.subr.mxu0 0.0
        %834 = vmatpush1.msra.mxu0 0.0
        %835 = vmatprep.subr.mxu0 0.0
        %836 = vmatpush1.msra.mxu0 %v717
        %837 = vmatprep.subr.mxu0 0.0
        %838 = vmatpush2.msra.mxu0 0.0
        %839 = vmatprep.subr.mxu0 0.0
        %840 = vmatpush2.msra.mxu0 0.0
        %841 = vmatprep.subr.mxu0 0.0
        %842 = vmatpush2.msra.mxu0 0.0
        %843 = vmatprep.subr.mxu0 0.0
        %844 = vmatpush2.msra.mxu0 0.0
        %845 = vmatprep.subr.mxu0 0.0
        %846 = vmatpush2.msra.mxu0 0.0
        %847 = vmatprep.subr.mxu0 0.0
        %848 = vmatpush2.msra.mxu0 0.0
        %849 = vmatprep.subr.mxu0 0.0
        %850 = vmatpush2.msra.mxu0 0.0
        %851 = vmatprep.subr.mxu0 0.0
        %852 = vmatpush2.msra.mxu0 0.0
        %853 = vmatprep.subr.mxu0 0.0
        %854 = vmatpush2.msra.mxu0 0.0
        %855 = vmatprep.subr.mxu0 0.0
        %856 = vmatpush2.msra.mxu0 0.0
        %857 = vmatprep.subr.mxu0 0.0
        %858 = vmatpush2.msra.mxu0 0.0
        %859 = vmatprep.subr.mxu0 0.0
        %860 = vmatpush2.msra.mxu0 0.0
        %861 = vmatprep.subr.mxu0 0.0
        %862 = vmatpush2.msra.mxu0 0.0
        %863 = vmatprep.subr.mxu0 0.0
        %864 = vmatpush2.msra.mxu0 0.0
        %865 = vmatprep.subr.mxu0 0.0
        %866 = vmatpush2.msra.mxu0 0.0
        %867 = vmatprep.subr.mxu0 0.0
        %868 = vmatpush2.msra.mxu0 0.0
        %869 = vmatprep.mubr.f32.mxu0 0.0
        %870 = vmatmul.mubr.f32.gmra.mxu0 %v724
        %v871 = vpop.f32.mrf.mxu0
        %v872 = vadd.f32 0.0, %v871
        %v873 = vpop.f32.mrf.mxu0
        %874 = vmatprep.mubr.f32.mxu0 0.0
        %875 = vmatmul.mubr.f32.gmra.mxu0 %v726
        %v876 = vpop.f32.mrf.mxu0
        %v877 = vadd.f32 0.0, %v876
        %v878 = vpop.f32.mrf.mxu0
        %879 = vdwg.mxu0
        %v880 = vadd.f32 %v702, %v795
        %v881 = vadd.f32 %v703, %v797
        %v882 = vadd.f32 %v704, %v872
        %v883 = vadd.f32 %v705, %v801
        %v884 = vadd.f32 %v706, %v803
        %v885 = vadd.f32 %v707, %v877
        %886 = vrot.lane.b32.xlu0 %v189, 96
        %v887 = vpop.permute.xlu0 %886
        %888 = vrot.lane.b32.xlu0 %v190, 96
        %v889 = vpop.permute.xlu0 %888
        %890 = vrot.lane.b32.xlu0 %v193, 92
        %v891 = vpop.permute.xlu0 %890
        %892 = vrot.lane.b32.xlu0 %v194, 92
        %v893 = vpop.permute.xlu0 %892
        %894 = vrot.lane.b32.xlu0 %v195, 92
        %v895 = vpop.permute.xlu0 %894
        %vm896 = vcmask 752640
        %v897 = vsel %vm896, %v891, %v893
        %v898 = vsel %vm896, %v893, %v895
        %v902 = vsel %vm217, %v887, 0
        %v904 = vsel %vm217, %v889, 0
        %906 = vmatprep.subr.mxu0 0.0
        %907 = vmatpush1.msra.mxu0 0.0
        %908 = vmatprep.subr.mxu0 0.0
        %909 = vmatpush1.msra.mxu0 0.0
        %910 = vmatprep.subr.mxu0 0.0
        %911 = vmatpush1.msra.mxu0 0.0
        %912 = vmatprep.subr.mxu0 0.0
        %913 = vmatpush1.msra.mxu0 0.0
        %914 = vmatprep.subr.mxu0 0.0
        %915 = vmatpush1.msra.mxu0 0.0
        %916 = vmatprep.subr.mxu0 0.0
        %917 = vmatpush1.msra.mxu0 0.0
        %918 = vmatprep.subr.mxu0 0.0
        %919 = vmatpush1.msra.mxu0 0.0
        %920 = vmatprep.subr.mxu0 0.0
        %921 = vmatpush1.msra.mxu0 0.0
        %922 = vmatprep.subr.mxu0 0.0
        %923 = vmatpush1.msra.mxu0 0.0
        %924 = vmatprep.subr.mxu0 0.0
        %925 = vmatpush1.msra.mxu0 0.0
        %926 = vmatprep.subr.mxu0 0.0
        %927 = vmatpush1.msra.mxu0 0.0
        %928 = vmatprep.subr.mxu0 0.0
        %929 = vmatpush1.msra.mxu0 0.0
        %930 = vmatprep.subr.mxu0 0.0
        %931 = vmatpush1.msra.mxu0 0.0
        %932 = vmatprep.subr.mxu0 0.0
        %933 = vmatpush1.msra.mxu0 0.0
        %934 = vmatprep.subr.mxu0 0.0
        %935 = vmatpush1.msra.mxu0 0.0
        %936 = vmatprep.subr.mxu0 %v898
        %937 = vmatpush1.msra.mxu0 %v897
        %938 = vmatprep.subr.mxu0 0.0
        %939 = vmatpush2.msra.mxu0 0.0
        %940 = vmatprep.subr.mxu0 0.0
        %941 = vmatpush2.msra.mxu0 0.0
        %942 = vmatprep.subr.mxu0 0.0
        %943 = vmatpush2.msra.mxu0 0.0
        %944 = vmatprep.subr.mxu0 0.0
        %945 = vmatpush2.msra.mxu0 0.0
        %946 = vmatprep.subr.mxu0 0.0
        %947 = vmatpush2.msra.mxu0 0.0
        %948 = vmatprep.subr.mxu0 0.0
        %949 = vmatpush2.msra.mxu0 0.0
        %950 = vmatprep.subr.mxu0 0.0
        %951 = vmatpush2.msra.mxu0 0.0
        %952 = vmatprep.subr.mxu0 0.0
        %953 = vmatpush2.msra.mxu0 0.0
        %954 = vmatprep.subr.mxu0 0.0
        %955 = vmatpush2.msra.mxu0 0.0
        %956 = vmatprep.subr.mxu0 0.0
        %957 = vmatpush2.msra.mxu0 0.0
        %958 = vmatprep.subr.mxu0 0.0
        %959 = vmatpush2.msra.mxu0 0.0
        %960 = vmatprep.subr.mxu0 0.0
        %961 = vmatpush2.msra.mxu0 0.0
        %962 = vmatprep.subr.mxu0 0.0
        %963 = vmatpush2.msra.mxu0 0.0
        %964 = vmatprep.subr.mxu0 0.0
        %965 = vmatpush2.msra.mxu0 0.0
        %966 = vmatprep.subr.mxu0 0.0
        %967 = vmatpush2.msra.mxu0 0.0
        %968 = vmatprep.subr.mxu0 0.0
        %969 = vmatpush2.msra.mxu0 0.0
        %970 = vmatprep.mubr.f32.mxu0 0.0
        %971 = vmatmul.mubr.f32.gmra.mxu0 %v902
        %v972 = vpop.f32.mrf.mxu0
        %v973 = vadd.f32 0.0, %v972
        %v974 = vpop.f32.mrf.mxu0
        %v975 = vadd.f32 0.0, %v974
        %976 = vmatprep.mubr.f32.mxu0 0.0
        %977 = vmatmul.mubr.f32.gmra.mxu0 %v904
        %v978 = vpop.f32.mrf.mxu0
        %v979 = vadd.f32 0.0, %v978
        %v980 = vpop.f32.mrf.mxu0
        %v981 = vadd.f32 0.0, %v980
        %982 = vdwg.mxu0
        %983 = vmatprep.subr.mxu0 0.0
        %984 = vmatpush1.msra.mxu0 0.0
        %985 = vmatprep.subr.mxu0 0.0
        %986 = vmatpush1.msra.mxu0 0.0
        %987 = vmatprep.subr.mxu0 0.0
        %988 = vmatpush1.msra.mxu0 0.0
        %989 = vmatprep.subr.mxu0 0.0
        %990 = vmatpush1.msra.mxu0 0.0
        %991 = vmatprep.subr.mxu0 0.0
        %992 = vmatpush1.msra.mxu0 0.0
        %993 = vmatprep.subr.mxu0 0.0
        %994 = vmatpush1.msra.mxu0 0.0
        %995 = vmatprep.subr.mxu0 0.0
        %996 = vmatpush1.msra.mxu0 0.0
        %997 = vmatprep.subr.mxu0 0.0
        %998 = vmatpush1.msra.mxu0 0.0
        %999 = vmatprep.subr.mxu0 0.0
        %1000 = vmatpush1.msra.mxu0 0.0
        %1001 = vmatprep.subr.mxu0 0.0
        %1002 = vmatpush1.msra.mxu0 0.0
        %1003 = vmatprep.subr.mxu0 0.0
        %1004 = vmatpush1.msra.mxu0 0.0
        %1005 = vmatprep.subr.mxu0 0.0
        %1006 = vmatpush1.msra.mxu0 0.0
        %1007 = vmatprep.subr.mxu0 0.0
        %1008 = vmatpush1.msra.mxu0 0.0
        %1009 = vmatprep.subr.mxu0 0.0
        %1010 = vmatpush1.msra.mxu0 0.0
        %1011 = vmatprep.subr.mxu0 0.0
        %1012 = vmatpush1.msra.mxu0 0.0
        %1013 = vmatprep.subr.mxu0 0.0
        %1014 = vmatpush1.msra.mxu0 %v895
        %1015 = vmatprep.subr.mxu0 0.0
        %1016 = vmatpush2.msra.mxu0 0.0
        %1017 = vmatprep.subr.mxu0 0.0
        %1018 = vmatpush2.msra.mxu0 0.0
        %1019 = vmatprep.subr.mxu0 0.0
        %1020 = vmatpush2.msra.mxu0 0.0
        %1021 = vmatprep.subr.mxu0 0.0
        %1022 = vmatpush2.msra.mxu0 0.0
        %1023 = vmatprep.subr.mxu0 0.0
        %1024 = vmatpush2.msra.mxu0 0.0
        %1025 = vmatprep.subr.mxu0 0.0
        %1026 = vmatpush2.msra.mxu0 0.0
        %1027 = vmatprep.subr.mxu0 0.0
        %1028 = vmatpush2.msra.mxu0 0.0
        %1029 = vmatprep.subr.mxu0 0.0
        %1030 = vmatpush2.msra.mxu0 0.0
        %1031 = vmatprep.subr.mxu0 0.0
        %1032 = vmatpush2.msra.mxu0 0.0
        %1033 = vmatprep.subr.mxu0 0.0
        %1034 = vmatpush2.msra.mxu0 0.0
        %1035 = vmatprep.subr.mxu0 0.0
        %1036 = vmatpush2.msra.mxu0 0.0
        %1037 = vmatprep.subr.mxu0 0.0
        %1038 = vmatpush2.msra.mxu0 0.0
        %1039 = vmatprep.subr.mxu0 0.0
        %1040 = vmatpush2.msra.mxu0 0.0
        %1041 = vmatprep.subr.mxu0 0.0
        %1042 = vmatpush2.msra.mxu0 0.0
        %1043 = vmatprep.subr.mxu0 0.0
        %1044 = vmatpush2.msra.mxu0 0.0
        %1045 = vmatprep.subr.mxu0 0.0
        %1046 = vmatpush2.msra.mxu0 0.0
        %1047 = vmatprep.mubr.f32.mxu0 0.0
        %1048 = vmatmul.mubr.f32.gmra.mxu0 %v902
        %v1049 = vpop.f32.mrf.mxu0
        %v1050 = vadd.f32 0.0, %v1049
        %v1051 = vpop.f32.mrf.mxu0
        %1052 = vmatprep.mubr.f32.mxu0 0.0
        %1053 = vmatmul.mubr.f32.gmra.mxu0 %v904
        %v1054 = vpop.f32.mrf.mxu0
        %v1055 = vadd.f32 0.0, %v1054
        %v1056 = vpop.f32.mrf.mxu0
        %1057 = vdwg.mxu0
        %v1058 = vadd.f32 %v880, %v973
        %v1059 = vadd.f32 %v881, %v975
        %v1060 = vadd.f32 %v882, %v1050
        %v1061 = vadd.f32 %v883, %v979
        %v1062 = vadd.f32 %v884, %v981
        %v1063 = vadd.f32 %v885, %v1055
        %1064 = vrot.lane.b32.xlu0 %v189, 88
        %v1065 = vpop.permute.xlu0 %1064
        %1066 = vrot.lane.b32.xlu0 %v190, 88
        %v1067 = vpop.permute.xlu0 %1066
        %1068 = vrot.lane.b32.xlu0 %v193, 91
        %v1069 = vpop.permute.xlu0 %1068
        %1070 = vrot.lane.b32.xlu0 %v194, 91
        %v1071 = vpop.permute.xlu0 %1070
        %1072 = vrot.lane.b32.xlu0 %v195, 91
        %v1073 = vpop.permute.xlu0 %1072
        %vm1074 = vcmask 744448
        %v1075 = vsel %vm1074, %v1069, %v1071
        %v1076 = vsel %vm1074, %v1071, %v1073
        %v1080 = vsel %vm217, %v1065, 0
        %v1082 = vsel %vm217, %v1067, 0
        %1084 = vmatprep.subr.mxu0 0.0
        %1085 = vmatpush1.msra.mxu0 0.0
        %1086 = vmatprep.subr.mxu0 0.0
        %1087 = vmatpush1.msra.mxu0 0.0
        %1088 = vmatprep.subr.mxu0 0.0
        %1089 = vmatpush1.msra.mxu0 0.0
        %1090 = vmatprep.subr.mxu0 0.0
        %1091 = vmatpush1.msra.mxu0 0.0
        %1092 = vmatprep.subr.mxu0 0.0
        %1093 = vmatpush1.msra.mxu0 0.0
        %1094 = vmatprep.subr.mxu0 0.0
        %1095 = vmatpush1.msra.mxu0 0.0
        %1096 = vmatprep.subr.mxu0 0.0
        %1097 = vmatpush1.msra.mxu0 0.0
        %1098 = vmatprep.subr.mxu0 0.0
        %1099 = vmatpush1.msra.mxu0 0.0
        %1100 = vmatprep.subr.mxu0 0.0
        %1101 = vmatpush1.msra.mxu0 0.0
        %1102 = vmatprep.subr.mxu0 0.0
        %1103 = vmatpush1.msra.mxu0 0.0
        %1104 = vmatprep.subr.mxu0 0.0
        %1105 = vmatpush1.msra.mxu0 0.0
        %1106 = vmatprep.subr.mxu0 0.0
        %1107 = vmatpush1.msra.mxu0 0.0
        %1108 = vmatprep.subr.mxu0 0.0
        %1109 = vmatpush1.msra.mxu0 0.0
        %1110 = vmatprep.subr.mxu0 0.0
        %1111 = vmatpush1.msra.mxu0 0.0
        %1112 = vmatprep.subr.mxu0 0.0
        %1113 = vmatpush1.msra.mxu0 0.0
        %1114 = vmatprep.subr.mxu0 %v1076
        %1115 = vmatpush1.msra.mxu0 %v1075
        %1116 = vmatprep.subr.mxu0 0.0
        %1117 = vmatpush2.msra.mxu0 0.0
        %1118 = vmatprep.subr.mxu0 0.0
        %1119 = vmatpush2.msra.mxu0 0.0
        %1120 = vmatprep.subr.mxu0 0.0
        %1121 = vmatpush2.msra.mxu0 0.0
        %1122 = vmatprep.subr.mxu0 0.0
        %1123 = vmatpush2.msra.mxu0 0.0
        %1124 = vmatprep.subr.mxu0 0.0
        %1125 = vmatpush2.msra.mxu0 0.0
        %1126 = vmatprep.subr.mxu0 0.0
        %1127 = vmatpush2.msra.mxu0 0.0
        %1128 = vmatprep.subr.mxu0 0.0
        %1129 = vmatpush2.msra.mxu0 0.0
        %1130 = vmatprep.subr.mxu0 0.0
        %1131 = vmatpush2.msra.mxu0 0.0
        %1132 = vmatprep.subr.mxu0 0.0
        %1133 = vmatpush2.msra.mxu0 0.0
        %1134 = vmatprep.subr.mxu0 0.0
        %1135 = vmatpush2.msra.mxu0 0.0
        %1136 = vmatprep.subr.mxu0 0.0
        %1137 = vmatpush2.msra.mxu0 0.0
        %1138 = vmatprep.subr.mxu0 0.0
        %1139 = vmatpush2.msra.mxu0 0.0
        %1140 = vmatprep.subr.mxu0 0.0
        %1141 = vmatpush2.msra.mxu0 0.0
        %1142 = vmatprep.subr.mxu0 0.0
        %1143 = vmatpush2.msra.mxu0 0.0
        %1144 = vmatprep.subr.mxu0 0.0
        %1145 = vmatpush2.msra.mxu0 0.0
        %1146 = vmatprep.subr.mxu0 0.0
        %1147 = vmatpush2.msra.mxu0 0.0
        %1148 = vmatprep.mubr.f32.mxu0 0.0
        %1149 = vmatmul.mubr.f32.gmra.mxu0 %v1080
        %v1150 = vpop.f32.mrf.mxu0
        %v1151 = vadd.f32 0.0, %v1150
        %v1152 = vpop.f32.mrf.mxu0
        %v1153 = vadd.f32 0.0, %v1152
        %1154 = vmatprep.mubr.f32.mxu0 0.0
        %1155 = vmatmul.mubr.f32.gmra.mxu0 %v1082
        %v1156 = vpop.f32.mrf.mxu0
        %v1157 = vadd.f32 0.0, %v1156
        %v1158 = vpop.f32.mrf.mxu0
        %v1159 = vadd.f32 0.0, %v1158
        %1160 = vdwg.mxu0
        %1161 = vmatprep.subr.mxu0 0.0
        %1162 = vmatpush1.msra.mxu0 0.0
        %1163 = vmatprep.subr.mxu0 0.0
        %1164 = vmatpush1.msra.mxu0 0.0
        %1165 = vmatprep.subr.mxu0 0.0
        %1166 = vmatpush1.msra.mxu0 0.0
        %1167 = vmatprep.subr.mxu0 0.0
        %1168 = vmatpush1.msra.mxu0 0.0
        %1169 = vmatprep.subr.mxu0 0.0
        %1170 = vmatpush1.msra.mxu0 0.0
        %1171 = vmatprep.subr.mxu0 0.0
        %1172 = vmatpush1.msra.mxu0 0.0
        %1173 = vmatprep.subr.mxu0 0.0
        %1174 = vmatpush1.msra.mxu0 0.0
        %1175 = vmatprep.subr.mxu0 0.0
        %1176 = vmatpush1.msra.mxu0 0.0
        %1177 = vmatprep.subr.mxu0 0.0
        %1178 = vmatpush1.msra.mxu0 0.0
        %1179 = vmatprep.subr.mxu0 0.0
        %1180 = vmatpush1.msra.mxu0 0.0
        %1181 = vmatprep.subr.mxu0 0.0
        %1182 = vmatpush1.msra.mxu0 0.0
        %1183 = vmatprep.subr.mxu0 0.0
        %1184 = vmatpush1.msra.mxu0 0.0
        %1185 = vmatprep.subr.mxu0 0.0
        %1186 = vmatpush1.msra.mxu0 0.0
        %1187 = vmatprep.subr.mxu0 0.0
        %1188 = vmatpush1.msra.mxu0 0.0
        %1189 = vmatprep.subr.mxu0 0.0
        %1190 = vmatpush1.msra.mxu0 0.0
        %1191 = vmatprep.subr.mxu0 0.0
        %1192 = vmatpush1.msra.mxu0 %v1073
        %1193 = vmatprep.subr.mxu0 0.0
        %1194 = vmatpush2.msra.mxu0 0.0
        %1195 = vmatprep.subr.mxu0 0.0
        %1196 = vmatpush2.msra.mxu0 0.0
        %1197 = vmatprep.subr.mxu0 0.0
        %1198 = vmatpush2.msra.mxu0 0.0
        %1199 = vmatprep.subr.mxu0 0.0
        %1200 = vmatpush2.msra.mxu0 0.0
        %1201 = vmatprep.subr.mxu0 0.0
        %1202 = vmatpush2.msra.mxu0 0.0
        %1203 = vmatprep.subr.mxu0 0.0
        %1204 = vmatpush2.msra.mxu0 0.0
        %1205 = vmatprep.subr.mxu0 0.0
        %1206 = vmatpush2.msra.mxu0 0.0
        %1207 = vmatprep.subr.mxu0 0.0
        %1208 = vmatpush2.msra.mxu0 0.0
        %1209 = vmatprep.subr.mxu0 0.0
        %1210 = vmatpush2.msra.mxu0 0.0
        %1211 = vmatprep.subr.mxu0 0.0
        %1212 = vmatpush2.msra.mxu0 0.0
        %1213 = vmatprep.subr.mxu0 0.0
        %1214 = vmatpush2.msra.mxu0 0.0
        %1215 = vmatprep.subr.mxu0 0.0
        %1216 = vmatpush2.msra.mxu0 0.0
        %1217 = vmatprep.subr.mxu0 0.0
        %1218 = vmatpush2.msra.mxu0 0.0
        %1219 = vmatprep.subr.mxu0 0.0
        %1220 = vmatpush2.msra.mxu0 0.0
        %1221 = vmatprep.subr.mxu0 0.0
        %1222 = vmatpush2.msra.mxu0 0.0
        %1223 = vmatprep.subr.mxu0 0.0
        %1224 = vmatpush2.msra.mxu0 0.0
        %1225 = vmatprep.mubr.f32.mxu0 0.0
        %1226 = vmatmul.mubr.f32.gmra.mxu0 %v1080
        %v1227 = vpop.f32.mrf.mxu0
        %v1228 = vadd.f32 0.0, %v1227
        %v1229 = vpop.f32.mrf.mxu0
        %1230 = vmatprep.mubr.f32.mxu0 0.0
        %1231 = vmatmul.mubr.f32.gmra.mxu0 %v1082
        %v1232 = vpop.f32.mrf.mxu0
        %v1233 = vadd.f32 0.0, %v1232
        %v1234 = vpop.f32.mrf.mxu0
        %1235 = vdwg.mxu0
        %v1236 = vadd.f32 %v1058, %v1151
        %v1237 = vadd.f32 %v1059, %v1153
        %v1238 = vadd.f32 %v1060, %v1228
        %v1239 = vadd.f32 %v1061, %v1157
        %v1240 = vadd.f32 %v1062, %v1159
        %v1241 = vadd.f32 %v1063, %v1233
        %1243 = vset.pattern.permute.xlu0 0
        %1244 = vperm.xlu0 %1243, %v191
        %v1245 = vpop.permute.xlu0 %1244
        %1248 = vset.pattern.permute.xlu0 0
        %1249 = vperm.xlu0 %1248, %v192
        %v1250 = vpop.permute.xlu0 %1249
        %v1252 = vadd.f32 %v1236, %v1245
        %v1253 = vadd.f32 %v1237, %v1245
        %v1254 = vadd.f32 %v1238, %v1245
        %v1255 = vadd.f32 %v1239, %v1250
        %v1256 = vadd.f32 %v1240, %v1250
        %v1257 = vadd.f32 %v1241, %v1250
        %1258 = vst [vmem:[%s188] sm:$0xff] %v1252
        %1259 = vst [vmem:[%s188 + $0x8] sm:$0xff] %v1253
        %vm1260 = vcmask 261120
        %1261 = vst.msk [vmem:[%s188 + $0x10] sm:$0xff] %vm1260, %v1254
        %1262 = vst [vmem:[%s188 + $0x18] sm:$0xf] %v1255
        %1263 = vst [vmem:[%s188 + $0x20] sm:$0xf] %v1256
        %vm1264 = vcmask 257024
        %1265 = vst.msk [vmem:[%s188 + $0x28] sm:$0xf] %vm1264, %v1257
        %p1266 = scmp.lt.s32.totalorder %s17, 1
        %s1267 = scalar_select %p1266, %s17, 1
        %s1268 = smul.addr %s1267, 6
        %s1269 = smul.addr %s1268, 8
        %s1270 = scalar_lea.vmem %s3, %s1269
        // Predicated region
        $region37: #{tpu_custom_call.1} parent=31 // pred_check
          %p1271 = pneg %p103
        $region38: #{tpu_custom_call.1} parent=31 // pred_check_branch
          %1273 = sbr.rel (%p1271) target = $region40
        $region39: #{tpu_custom_call.1} parent=31 // pred_region
          _
        $region40: #{tpu_custom_call.1} parent=31 // pred_fallthru
          _
      $region32: #{tpu_custom_call.1} parent=5 // pred_fallthru
        _
      %p1274 = scmp.le.s32.totalorder 2, %s12
      // Predicated region
      $region41: #{tpu_custom_call.1} parent=5 // pred_check
        %p1275 = pneg %p1274
      $region42: #{tpu_custom_call.1} parent=5 // pred_check_branch
        %1277 = sbr.rel (%p1275) target = $region44
      $region43: #{tpu_custom_call.1} parent=5 // pred_region
        %s1278 = ssub.s32 %s12, 2
        // Predicated region
        $region45: #{tpu_custom_call.1} parent=43 // pred_check
          %p1279 = pneg %p109
        $region46: #{tpu_custom_call.1} parent=43 // pred_check_branch
          %1281 = sbr.rel (%p1279) target = $region48
        $region47: #{tpu_custom_call.1} parent=43 // pred_region
          %p1282 = scmp.lt.s32.totalorder %s18, 1
          %s1283 = scalar_select %p1282, %s18, 1
          %s1284 = smul.addr %s1283, 6
          %s1285 = smul.addr %s1284, 8
          %s1286 = scalar_lea.vmem %s3, %s1285
        $region48: #{tpu_custom_call.1} parent=43 // pred_fallthru
          _
      $region44: #{tpu_custom_call.1} parent=5 // pred_fallthru
        _
    $region6: #{tpu_custom_call.1} parent=1 // loop_footer
      %s16 = sadd.s32 1, %s12
    $region7: #{tpu_custom_call.1} parent=1 // loop_footer_branch
      %11 = sbr.rel target = $region3
    $region8: #{tpu_custom_call.1} parent=1 // loop_exit
      _
    %1287 = vsyncpa [#allocation3], 1
    %s1288 = scalar_lea.sflag [#allocation3], 1
    %1289 = vsyncpa %s1288, 1

</llo_original>
